<compile_context>
chip_gen: v5e
topology: v5e:2x2
jax: 0.10.0
libtpu: 0.0.40
codegen_flags: <defaults>
</compile_context>

<pallas_src>
import jax
import jax.numpy as jnp
from jax import lax
from jax.experimental import pallas as pl
from jax.experimental.pallas import tpu as pltpu

_LANE = 128            # TPU lane width
_MAX_LANE_BLOCK = 2048  # upper bound on lanes per grid step
_VMEM_BUDGET = 24 << 20  # keep the working set well under v7x's scoped VMEM


def _pick_strip_rows(OH, max_rows=8):
    """Rows of output computed per inner-loop strip (divisor of OH, <= 8)."""
    if OH <= max_rows:
        return OH
    for d in range(max_rows, 0, -1):
        if OH % d == 0:
            return d
    return OH  # unreachable


def _choose_lane_block(B, H, W, OH, OW, KH, KW, SR):
    """Lanes per grid step: VMEM-budgeted, multiple of 128, >= 2 grid blocks."""
    if B <= _LANE:
        # block dim == full array dim: legal, no lane padding (masked stores
        # are acceptable for tiny batches).
        return B
    strip_h = SR + KH - 1
    # f32 bytes live per lane: double-buffered in/out pipeline blocks plus the
    # per-strip working set (x strip, KW shifted copies, KH partials + acc).
    per_lane = 4 * (2 * H * W + 2 * OH * OW
                    + strip_h * W * (KW + 1)
                    + SR * W * (KH + 1))
    cap = max(_LANE, (_VMEM_BUDGET // per_lane) // _LANE * _LANE)
    lb = min(_MAX_LANE_BLOCK, cap, pl.cdiv(B, _LANE) * _LANE)
    # Keep at least 2 grid blocks when the batch allows it so
    # dimension_semantics=("parallel",) actually feeds both v7x TensorCores.
    lb = min(lb, max(_LANE, pl.cdiv(B, 2 * _LANE) * _LANE))
    return lb


def _make_conv2d_kernel(KH, KW, OH, OW, W, SR, out_dtype):
    """Per-block kernel (batch-on-lanes).

    Block layout:
      w_ref : (KH*KW,)        SMEM  -- flat scalar taps (avoids 2-D SMEM pad)
      b_ref : (1,)            SMEM  -- scalar bias
      x_ref : (H,  W,  LB)    VMEM  -- LB conv instances on lanes
      o_ref : (OH, OW, LB)    VMEM  -- lane-dense output
    """
    n_strips = OH // SR
    strip_h = SR + KH - 1

    def kernel(w_ref, b_ref, x_ref, o_ref):
        # Hoist all scalar SMEM reads out of the strip loop.
        w = [w_ref[t] for t in range(KH * KW)]
        b = b_ref[0]

        def strip_body(s, carry):
            r0 = pl.multiple_of(s * SR, SR)
            # Load only the SR+KH-1 input rows this strip needs (bounds the
            # live vreg footprint; leading-axis slice is a pure offset).
            xs = x_ref[pl.ds(r0, strip_h)].astype(jnp.float32)

            # KW-1 XLU column rolls per strip, reused for every kernel row i
            # (instead of KH*KW unaligned sublane slices).
            shifted = [xs]
            for j in range(1, KW):
                shifted.append(pltpu.roll(xs, (-j) % W, axis=1))

            # KH independent partial accumulators (short dependency chains
            # across the 4 VALU slots); bias folded into the first partial.
            parts = []
            for i in range(KH):
                p = w[i * KW] * shifted[0][i:i + SR]
                if i == 0:
                    p = p + b
                for j in range(1, KW):
                    p = p + w[i * KW + j] * shifted[j][i:i + SR]
                parts.append(p)
            acc = parts[0]
            for p in parts[1:]:
                acc = acc + p

            # Static column slice drops the roll wrap-around columns (>= OW);
            # single lane-dense store of this output strip, cast at the store.
            o_ref[pl.ds(r0, SR)] = acc[:, :OW, :].astype(out_dtype)
            return carry

        lax.fori_loop(0, n_strips, strip_body, 0, unroll=True)

    return kernel


def conv2d_forward_lanes(x_hwb, weight, bias):
    """Layout-native batched Conv2D.forward.

    x_hwb  : (H, W, B)  -- B independent conv instances on the trailing axis
    weight : (KH, KW)
    bias   : (1,)
    returns: (OH, OW, B) in x_hwb.dtype, OH = H-KH+1, OW = W-KW+1
    """
    H, W, B = x_hwb.shape
    KH, KW = weight.shape
    if KH > H or KW > W:
        raise ValueError("kernel larger than input")
    OH, OW = H - KH + 1, W - KW + 1

    out_dtype = x_hwb.dtype if jnp.issubdtype(x_hwb.dtype, jnp.floating) \
        else jnp.float32

    SR = _pick_strip_rows(OH)
    LB = _choose_lane_block(B, H, W, OH, OW, KH, KW, SR)
    nb = max(1, pl.cdiv(B, LB))
    Bp = nb * LB

    xt = x_hwb
    if Bp != B:
        xt = jnp.pad(xt, ((0, 0), (0, 0), (0, Bp - B)))

    w_flat = weight.reshape(-1).astype(jnp.float32)   # 1-D SMEM (no 2-D pad)
    b_f32 = bias.astype(jnp.float32)

    # TODO(synk): for large H*W add a row-tiled grid with a KH-1 halo; at
    # these spatial sizes one block per lane slab is optimal on v5e/v6e/v7x.
    out = pl.pallas_call(
        _make_conv2d_kernel(KH, KW, OH, OW, W, SR, out_dtype),
        out_shape=jax.ShapeDtypeStruct((OH, OW, Bp), out_dtype),
        grid=(nb,),
        in_specs=[
            pl.BlockSpec(memory_space=pltpu.MemorySpace.SMEM),   # weight taps
            pl.BlockSpec(memory_space=pltpu.MemorySpace.SMEM),   # bias
            pl.BlockSpec((H, W, LB), lambda b: (0, 0, b)),       # x lane slab
        ],
        out_specs=pl.BlockSpec((OH, OW, LB), lambda b: (0, 0, b)),
        compiler_params=pltpu.CompilerParams(
            # Lane slabs are independent: shard across v7x's 2 TensorCores.
            dimension_semantics=("parallel",),
        ),
    )(w_flat, b_f32, xt)

    return out[:, :, :B] if Bp != B else out


def conv2d_forward_batched(xb, weight, bias):
    """Convenience wrapper for (B, H, W) inputs -> (B, OH, OW) outputs.

    Note: the two transposes here are extra HBM passes; prefer
    conv2d_forward_lanes with (H, W, B) data when the caller can supply it.
    """
    out = conv2d_forward_lanes(jnp.transpose(xb, (1, 2, 0)), weight, bias)
    return jnp.transpose(out, (2, 0, 1))


def conv2d_forward(x, weight, bias):
    """Exact equivalent of Conv2D.forward for a single (H, W) matrix."""
    return conv2d_forward_lanes(x[:, :, None], weight, bias)[:, :, 0]


def conv2d_reference_batched(xb, weight, bias):
    """Pure-JAX reference of cov2d(x, weight) + bias over a (B, H, W) batch."""
    _, H, W = xb.shape
    KH, KW = weight.shape
    OH, OW = H - KH + 1, W - KW + 1
    out = jnp.zeros((xb.shape[0], OH, OW), jnp.float32)
    for i in range(KH):
        for j in range(KW):
            out = out + weight[i, j] * xb[:, i:i + OH, j:j + OW].astype(jnp.float32)
    return out + bias[0]


if __name__ == "__main__":
    key = jax.random.PRNGKey(0)
    kx, kw, kb = jax.random.split(key, 3)

    # Small shapes consistent with the module: (16, 16) matrices, 3x3 kernel,
    # bias (1,).  A batch of 8 exercises the small-batch (unpadded-lane) path.
    B, H, W = 8, 16, 16
    xb = jax.random.normal(kx, (B, H, W), dtype=jnp.float32)
    weight = jax.random.normal(kw, (3, 3), dtype=jnp.float32)
    bias = jax.random.normal(kb, (1,), dtype=jnp.float32)

    y_ref = conv2d_reference_batched(xb, weight, bias)

    yb = jax.block_until_ready(conv2d_forward_batched(xb, weight, bias))
    assert yb.shape == (B, 14, 14)
    assert jnp.allclose(yb, y_ref, atol=1e-4, rtol=1e-5)

    # Module-equivalent single-matrix forward (Conv2D.forward(x)).
    y0 = jax.block_until_ready(conv2d_forward(xb[0], weight, bias))
    assert y0.shape == (14, 14)
    assert jnp.allclose(y0, y_ref[0], atol=1e-4, rtol=1e-5)

    # Layout-native path with B > 128: exercises lane padding + a >=2-block
    # grid (megacore parallel) + the multi-strip inner loop.
    B2 = 200
    xb2 = jax.random.normal(kx, (B2, H, W), dtype=jnp.float32)
    y2 = jax.block_until_ready(
        conv2d_forward_lanes(jnp.transpose(xb2, (1, 2, 0)), weight, bias))
    y2_ref = jnp.transpose(conv2d_reference_batched(xb2, weight, bias), (1, 2, 0))
    assert y2.shape == (14, 14, B2)
    assert jnp.allclose(y2, y2_ref, atol=1e-4, rtol=1e-5)

    print("KERNEL_OK")
</pallas_src>

<mosaic_0001>
module attributes {stable_mosaic.version = 11 : i64} {
  func.func @kernel(%arg0: i32, %arg1: memref<9xf32, #tpu.memory_space<smem>>, %arg2: memref<1xf32, #tpu.memory_space<smem>>, %arg3: memref<16x16x8xf32, #tpu.memory_space<vmem>>, %arg4: memref<14x14x8xf32, #tpu.memory_space<vmem>>) attributes {dimension_semantics = [#tpu.dimension_semantics<parallel>], iteration_bounds = array<i64: 1>, scalar_prefetch = 0 : i64, scratch_operands = 0 : i64, tpu.core_type = #tpu.core_type<tc>, window_params = [{transform_indices = @transform_0, window_bounds = array<i64: 9>}, {transform_indices = @transform_1, window_bounds = array<i64: 1>}, {transform_indices = @transform_2, window_bounds = array<i64: 16, 16, 8>}, {transform_indices = @transform_3, window_bounds = array<i64: 14, 14, 8>}]} {
    %c0 = arith.constant 0 : index
    %0 = memref.load %arg1[%c0] : memref<9xf32, #tpu.memory_space<smem>>
    %c1 = arith.constant 1 : index
    %1 = memref.load %arg1[%c1] : memref<9xf32, #tpu.memory_space<smem>>
    %c2 = arith.constant 2 : index
    %2 = memref.load %arg1[%c2] : memref<9xf32, #tpu.memory_space<smem>>
    %c3 = arith.constant 3 : index
    %3 = memref.load %arg1[%c3] : memref<9xf32, #tpu.memory_space<smem>>
    %c4 = arith.constant 4 : index
    %4 = memref.load %arg1[%c4] : memref<9xf32, #tpu.memory_space<smem>>
    %c5 = arith.constant 5 : index
    %5 = memref.load %arg1[%c5] : memref<9xf32, #tpu.memory_space<smem>>
    %c6 = arith.constant 6 : index
    %6 = memref.load %arg1[%c6] : memref<9xf32, #tpu.memory_space<smem>>
    %c7 = arith.constant 7 : index
    %7 = memref.load %arg1[%c7] : memref<9xf32, #tpu.memory_space<smem>>
    %c8 = arith.constant 8 : index
    %8 = memref.load %arg1[%c8] : memref<9xf32, #tpu.memory_space<smem>>
    %c0_0 = arith.constant 0 : index
    %9 = memref.load %arg2[%c0_0] : memref<1xf32, #tpu.memory_space<smem>>
    %c0_i32 = arith.constant 0 : i32
    %c7_i32 = arith.constant 7 : i32
    %10 = arith.muli %c0_i32, %c7_i32 : i32
    %11 = tpu.assume_multiple %10, 7 : i32
    %12 = arith.index_cast %11 : i32 to index
    %c0_1 = arith.constant 0 : index
    %c0_2 = arith.constant 0 : index
    %13 = vector.load %arg3[%12, %c0_1, %c0_2] : memref<16x16x8xf32, #tpu.memory_space<vmem>>, vector<9x16x8xf32>
    %c15_i32 = arith.constant 15 : i32
    %14 = tpu.dynamic_rotate %13 by %c15_i32 dim 1 : vector<9x16x8xf32>, i32 -> vector<9x16x8xf32>
    %c14_i32 = arith.constant 14 : i32
    %15 = tpu.dynamic_rotate %13 by %c14_i32 dim 1 : vector<9x16x8xf32>, i32 -> vector<9x16x8xf32>
    %16 = vector.extract_strided_slice %13 {offsets = [0, 0, 0], sizes = [7, 16, 8], strides = [1, 1, 1]} : vector<9x16x8xf32> to vector<7x16x8xf32>
    %17 = vector.broadcast %0 : f32 to vector<7x16x8xf32>
    %18 = arith.mulf %17, %16 : vector<7x16x8xf32>
    %19 = vector.broadcast %9 : f32 to vector<7x16x8xf32>
    %20 = arith.addf %18, %19 : vector<7x16x8xf32>
    %21 = vector.extract_strided_slice %14 {offsets = [0, 0, 0], sizes = [7, 16, 8], strides = [1, 1, 1]} : vector<9x16x8xf32> to vector<7x16x8xf32>
    %22 = vector.broadcast %1 : f32 to vector<7x16x8xf32>
    %23 = arith.mulf %22, %21 : vector<7x16x8xf32>
    %24 = arith.addf %20, %23 : vector<7x16x8xf32>
    %25 = vector.extract_strided_slice %15 {offsets = [0, 0, 0], sizes = [7, 16, 8], strides = [1, 1, 1]} : vector<9x16x8xf32> to vector<7x16x8xf32>
    %26 = vector.broadcast %2 : f32 to vector<7x16x8xf32>
    %27 = arith.mulf %26, %25 : vector<7x16x8xf32>
    %28 = arith.addf %24, %27 : vector<7x16x8xf32>
    %29 = vector.extract_strided_slice %13 {offsets = [1, 0, 0], sizes = [7, 16, 8], strides = [1, 1, 1]} : vector<9x16x8xf32> to vector<7x16x8xf32>
    %30 = vector.broadcast %3 : f32 to vector<7x16x8xf32>
    %31 = arith.mulf %30, %29 : vector<7x16x8xf32>
    %32 = vector.extract_strided_slice %14 {offsets = [1, 0, 0], sizes = [7, 16, 8], strides = [1, 1, 1]} : vector<9x16x8xf32> to vector<7x16x8xf32>
    %33 = vector.broadcast %4 : f32 to vector<7x16x8xf32>
    %34 = arith.mulf %33, %32 : vector<7x16x8xf32>
    %35 = arith.addf %31, %34 : vector<7x16x8xf32>
    %36 = vector.extract_strided_slice %15 {offsets = [1, 0, 0], sizes = [7, 16, 8], strides = [1, 1, 1]} : vector<9x16x8xf32> to vector<7x16x8xf32>
    %37 = vector.broadcast %5 : f32 to vector<7x16x8xf32>
    %38 = arith.mulf %37, %36 : vector<7x16x8xf32>
    %39 = arith.addf %35, %38 : vector<7x16x8xf32>
    %40 = vector.extract_strided_slice %13 {offsets = [2, 0, 0], sizes = [7, 16, 8], strides = [1, 1, 1]} : vector<9x16x8xf32> to vector<7x16x8xf32>
    %41 = vector.broadcast %6 : f32 to vector<7x16x8xf32>
    %42 = arith.mulf %41, %40 : vector<7x16x8xf32>
    %43 = vector.extract_strided_slice %14 {offsets = [2, 0, 0], sizes = [7, 16, 8], strides = [1, 1, 1]} : vector<9x16x8xf32> to vector<7x16x8xf32>
    %44 = vector.broadcast %7 : f32 to vector<7x16x8xf32>
    %45 = arith.mulf %44, %43 : vector<7x16x8xf32>
    %46 = arith.addf %42, %45 : vector<7x16x8xf32>
    %47 = vector.extract_strided_slice %15 {offsets = [2, 0, 0], sizes = [7, 16, 8], strides = [1, 1, 1]} : vector<9x16x8xf32> to vector<7x16x8xf32>
    %48 = vector.broadcast %8 : f32 to vector<7x16x8xf32>
    %49 = arith.mulf %48, %47 : vector<7x16x8xf32>
    %50 = arith.addf %46, %49 : vector<7x16x8xf32>
    %51 = arith.addf %28, %39 : vector<7x16x8xf32>
    %52 = arith.addf %51, %50 : vector<7x16x8xf32>
    %53 = vector.extract_strided_slice %52 {offsets = [0, 0, 0], sizes = [7, 14, 8], strides = [1, 1, 1]} : vector<7x16x8xf32> to vector<7x14x8xf32>
    %54 = arith.index_cast %11 : i32 to index
    %c0_3 = arith.constant 0 : index
    %c0_4 = arith.constant 0 : index
    %55 = vector.load %arg4[%54, %c0_3, %c0_4] : memref<14x14x8xf32, #tpu.memory_space<vmem>>, vector<7x14x8xf32>
    tpu.vector_store %arg4[%54, %c0_3, %c0_4], %53 {strides = array<i32>} : memref<14x14x8xf32, #tpu.memory_space<vmem>>, vector<7x14x8xf32>,
    %c1_i32 = arith.constant 1 : i32
    %c7_i32_5 = arith.constant 7 : i32
    %56 = arith.muli %c1_i32, %c7_i32_5 : i32
    %57 = tpu.assume_multiple %56, 7 : i32
    %58 = arith.index_cast %57 : i32 to index
    %c0_6 = arith.constant 0 : index
    %c0_7 = arith.constant 0 : index
    %59 = vector.load %arg3[%58, %c0_6, %c0_7] : memref<16x16x8xf32, #tpu.memory_space<vmem>>, vector<9x16x8xf32>
    %c15_i32_8 = arith.constant 15 : i32
    %60 = tpu.dynamic_rotate %59 by %c15_i32_8 dim 1 : vector<9x16x8xf32>, i32 -> vector<9x16x8xf32>
    %c14_i32_9 = arith.constant 14 : i32
    %61 = tpu.dynamic_rotate %59 by %c14_i32_9 dim 1 : vector<9x16x8xf32>, i32 -> vector<9x16x8xf32>
    %62 = vector.extract_strided_slice %59 {offsets = [0, 0, 0], sizes = [7, 16, 8], strides = [1, 1, 1]} : vector<9x16x8xf32> to vector<7x16x8xf32>
    %63 = vector.broadcast %0 : f32 to vector<7x16x8xf32>
    %64 = arith.mulf %63, %62 : vector<7x16x8xf32>
    %65 = vector.broadcast %9 : f32 to vector<7x16x8xf32>
    %66 = arith.addf %64, %65 : vector<7x16x8xf32>
    %67 = vector.extract_strided_slice %60 {offsets = [0, 0, 0], sizes = [7, 16, 8], strides = [1, 1, 1]} : vector<9x16x8xf32> to vector<7x16x8xf32>
    %68 = vector.broadcast %1 : f32 to vector<7x16x8xf32>
    %69 = arith.mulf %68, %67 : vector<7x16x8xf32>
    %70 = arith.addf %66, %69 : vector<7x16x8xf32>
    %71 = vector.extract_strided_slice %61 {offsets = [0, 0, 0], sizes = [7, 16, 8], strides = [1, 1, 1]} : vector<9x16x8xf32> to vector<7x16x8xf32>
    %72 = vector.broadcast %2 : f32 to vector<7x16x8xf32>
    %73 = arith.mulf %72, %71 : vector<7x16x8xf32>
    %74 = arith.addf %70, %73 : vector<7x16x8xf32>
    %75 = vector.extract_strided_slice %59 {offsets = [1, 0, 0], sizes = [7, 16, 8], strides = [1, 1, 1]} : vector<9x16x8xf32> to vector<7x16x8xf32>
    %76 = vector.broadcast %3 : f32 to vector<7x16x8xf32>
    %77 = arith.mulf %76, %75 : vector<7x16x8xf32>
    %78 = vector.extract_strided_slice %60 {offsets = [1, 0, 0], sizes = [7, 16, 8], strides = [1, 1, 1]} : vector<9x16x8xf32> to vector<7x16x8xf32>
    %79 = vector.broadcast %4 : f32 to vector<7x16x8xf32>
    %80 = arith.mulf %79, %78 : vector<7x16x8xf32>
    %81 = arith.addf %77, %80 : vector<7x16x8xf32>
    %82 = vector.extract_strided_slice %61 {offsets = [1, 0, 0], sizes = [7, 16, 8], strides = [1, 1, 1]} : vector<9x16x8xf32> to vector<7x16x8xf32>
    %83 = vector.broadcast %5 : f32 to vector<7x16x8xf32>
    %84 = arith.mulf %83, %82 : vector<7x16x8xf32>
    %85 = arith.addf %81, %84 : vector<7x16x8xf32>
    %86 = vector.extract_strided_slice %59 {offsets = [2, 0, 0], sizes = [7, 16, 8], strides = [1, 1, 1]} : vector<9x16x8xf32> to vector<7x16x8xf32>
    %87 = vector.broadcast %6 : f32 to vector<7x16x8xf32>
    %88 = arith.mulf %87, %86 : vector<7x16x8xf32>
    %89 = vector.extract_strided_slice %60 {offsets = [2, 0, 0], sizes = [7, 16, 8], strides = [1, 1, 1]} : vector<9x16x8xf32> to vector<7x16x8xf32>
    %90 = vector.broadcast %7 : f32 to vector<7x16x8xf32>
    %91 = arith.mulf %90, %89 : vector<7x16x8xf32>
    %92 = arith.addf %88, %91 : vector<7x16x8xf32>
    %93 = vector.extract_strided_slice %61 {offsets = [2, 0, 0], sizes = [7, 16, 8], strides = [1, 1, 1]} : vector<9x16x8xf32> to vector<7x16x8xf32>
    %94 = vector.broadcast %8 : f32 to vector<7x16x8xf32>
    %95 = arith.mulf %94, %93 : vector<7x16x8xf32>
    %96 = arith.addf %92, %95 : vector<7x16x8xf32>
    %97 = arith.addf %74, %85 : vector<7x16x8xf32>
    %98 = arith.addf %97, %96 : vector<7x16x8xf32>
    %99 = vector.extract_strided_slice %98 {offsets = [0, 0, 0], sizes = [7, 14, 8], strides = [1, 1, 1]} : vector<7x16x8xf32> to vector<7x14x8xf32>
    %100 = arith.index_cast %57 : i32 to index
    %c0_10 = arith.constant 0 : index
    %c0_11 = arith.constant 0 : index
    %101 = vector.load %arg4[%100, %c0_10, %c0_11] : memref<14x14x8xf32, #tpu.memory_space<vmem>>, vector<7x14x8xf32>
    tpu.vector_store %arg4[%100, %c0_10, %c0_11], %99 {strides = array<i32>} : memref<14x14x8xf32, #tpu.memory_space<vmem>>, vector<7x14x8xf32>,
    %c2_i32 = arith.constant 2 : i32
    return
  }
  func.func @transform_0(%arg0: i32) -> i32 {
    %c0_i32 = arith.constant 0 : i32
    %c0_i32_0 = arith.constant 0 : i32
    return %c0_i32 : i32
  }
  func.func @transform_1(%arg0: i32) -> i32 {
    %c0_i32 = arith.constant 0 : i32
    %c0_i32_0 = arith.constant 0 : i32
    return %c0_i32 : i32
  }
  func.func @transform_2(%arg0: i32) -> (i32, i32, i32) {
    %c0_i32 = arith.constant 0 : i32
    %c0_i32_0 = arith.constant 0 : i32
    %c0_i32_1 = arith.constant 0 : i32
    return %c0_i32, %c0_i32_0, %arg0 : i32, i32, i32
  }
  func.func @transform_3(%arg0: i32) -> (i32, i32, i32) {
    %c0_i32 = arith.constant 0 : i32
    %c0_i32_0 = arith.constant 0 : i32
    %c0_i32_1 = arith.constant 0 : i32
    return %c0_i32, %c0_i32_0, %arg0 : i32, i32, i32
  }
}

</mosaic_0001>

<llo_original>
// kernel: tpu_custom_call.1
$region0: #{tpu_custom_call.1}
  #allocation0 [shape = 'u32[]', space=smem, size = 0x4, offset = 0x4, fixed_abs, tag = 'smem constant byte address 0x4 - core index']
  #allocation1 [shape = 'u32[72,128]{1,0:T(1,128)}', space=vmem, size = 0x9000, scoped, tag = 'internal scratch']
  #allocation2 [shape = 'f32[1]{0:T(128)S(6)}', space=smem, size = 0x200, scoped, tag = 'scoped memory for tpu_custom_call.1']
  %s0 = inlined_call_operand.vmem [shape: f32[9], index: 0, kind: input, shape index: {}]
  %s1 = inlined_call_operand.<no memory space> [shape: f32[1], index: 1, kind: input, shape index: {}]
  %s2 = inlined_call_operand.vmem [shape: f32[16,16,8], index: 2, kind: input, shape index: {}]
  %s3 = inlined_call_operand.vmem [shape: f32[14,14,8], index: 3, kind: output, shape index: {}]
  %s4 = sld [smem:[#allocation0]]
  $region26: #{tpu_custom_call.1} parent=0
    _
  %s6 = ssub.s32 1, %s4
  %s7 = scalar_select 0, %s6, %s4
  %8 = sst [smem:[#allocation2]] %s1
  $region1: #{tpu_custom_call.1} parent=0
    #allocation3 [shape = 'u8[512]{0}', space=smem, size = 0x200, scoped, tag = 'input window, operand 0, single buffered']
    #allocation4 [shape = 's32[1]{0}', space=sflag, size = 0x4, scoped, tag = 'scoped memory for tpu_custom_call.1']
    %9 = vsyncpa [#allocation4], 0
    // Predicated region
    $region2: #{tpu_custom_call.1} parent=1 // pred_check
      _
    $region3: #{tpu_custom_call.1} parent=1 // pred_check_branch
      %11 = sbr.rel (0) target = $region5
    $region4: #{tpu_custom_call.1} parent=1 // pred_region
      %13 = vsyncadd [#allocation4], 0
      %s15 = sshll.u32 %s0, 4
      %s16 = int_to_ptr.vmem [resolvable:$true] %s15
      %18 = dma.vmem_to_smem %s16, 16, [#allocation3], [#allocation4]
    $region5: #{tpu_custom_call.1} parent=1 // pred_fallthru
      _
    // Predicated region
    $region6: #{tpu_custom_call.1} parent=1 // pred_check
      _
    $region7: #{tpu_custom_call.1} parent=1 // pred_check_branch
      %20 = sbr.rel (0) target = $region9
    $region8: #{tpu_custom_call.1} parent=1 // pred_region
      _
    $region9: #{tpu_custom_call.1} parent=1 // pred_fallthru
      _
    // Predicated region
    $region10: #{tpu_custom_call.1} parent=1 // pred_check
      _
    $region11: #{tpu_custom_call.1} parent=1 // pred_check_branch
      %22 = sbr.rel (0) target = $region13
    $region12: #{tpu_custom_call.1} parent=1 // pred_region
      _
    $region13: #{tpu_custom_call.1} parent=1 // pred_fallthru
      _
    // Predicated region
    $region14: #{tpu_custom_call.1} parent=1 // pred_check
      _
    $region15: #{tpu_custom_call.1} parent=1 // pred_check_branch
      %24 = sbr.rel (0) target = $region17
    $region16: #{tpu_custom_call.1} parent=1 // pred_region
      %26 = dma.done [#allocation4], 16
    $region17: #{tpu_custom_call.1} parent=1 // pred_fallthru
      _
    %27 = sfence
    %s28 = sld [smem:[#allocation3]]
    %s29 = sld [smem:[#allocation3 + $0x1]]
    %s30 = sld [smem:[#allocation3 + $0x2]]
    %s31 = sld [smem:[#allocation3 + $0x3]]
    %s32 = sld [smem:[#allocation3 + $0x4]]
    %s33 = sld [smem:[#allocation3 + $0x5]]
    %s34 = sld [smem:[#allocation3 + $0x6]]
    %s35 = sld [smem:[#allocation3 + $0x7]]
    %s36 = sld [smem:[#allocation3 + $0x8]]
    %s37 = sld [smem:[#allocation2]]
    %s38 = smul.u32 0, 16
    %s39 = scalar_lea.vmem %s2, %s38
    %v40 = vld [vmem:[%s39] sm:$0xff]
    %v41 = vld [vmem:[%s39 + $0x8] sm:$0xff]
    %v42 = vld [vmem:[%s39 + $0x10] sm:$0xff]
    %v43 = vld [vmem:[%s39 + $0x18] sm:$0xff]
    %v44 = vld [vmem:[%s39 + $0x20] sm:$0xff]
    %v45 = vld [vmem:[%s39 + $0x28] sm:$0xff]
    %v46 = vld [vmem:[%s39 + $0x30] sm:$0xff]
    %v47 = vld [vmem:[%s39 + $0x38] sm:$0xff]
    %v48 = vld [vmem:[%s39 + $0x40] sm:$0xff]
    %v49 = vld [vmem:[%s39 + $0x48] sm:$0xff]
    %v50 = vld [vmem:[%s39 + $0x50] sm:$0xff]
    %v51 = vld [vmem:[%s39 + $0x58] sm:$0xff]
    %v52 = vld [vmem:[%s39 + $0x60] sm:$0xff]
    %v53 = vld [vmem:[%s39 + $0x68] sm:$0xff]
    %v54 = vld [vmem:[%s39 + $0x70] sm:$0xff]
    %v55 = vld [vmem:[%s39 + $0x78] sm:$0xff]
    %v56 = vld [vmem:[%s39 + $0x80] sm:$0xff]
    %v57 = vld [vmem:[%s39 + $0x88] sm:$0xff]
    %v58 = vrot.slane %v40, 1
    %v59 = vrot.slane %v42, 1
    %v60 = vrot.slane %v44, 1
    %v61 = vrot.slane %v46, 1
    %v62 = vrot.slane %v48, 1
    %v63 = vrot.slane %v50, 1
    %v64 = vrot.slane %v52, 1
    %v65 = vrot.slane %v54, 1
    %v66 = vrot.slane %v56, 1
    %v67 = vrot.slane %v41, 1
    %v68 = vrot.slane %v43, 1
    %v69 = vrot.slane %v45, 1
    %v70 = vrot.slane %v47, 1
    %v71 = vrot.slane %v49, 1
    %v72 = vrot.slane %v51, 1
    %v73 = vrot.slane %v53, 1
    %v74 = vrot.slane %v55, 1
    %v75 = vrot.slane %v57, 1
    %v76 = vlaneseq
    %v77 = vshrl.u32 %v76, 7
    %vm78 = vcmp.lt.s32.totalorder %v77, 7
    %v79 = vsel %vm78, %v58, %v67
    %v80 = vsel %vm78, %v59, %v68
    %v81 = vsel %vm78, %v60, %v69
    %v82 = vsel %vm78, %v61, %v70
    %v83 = vsel %vm78, %v62, %v71
    %v84 = vsel %vm78, %v63, %v72
    %v85 = vsel %vm78, %v64, %v73
    %v86 = vsel %vm78, %v65, %v74
    %v87 = vsel %vm78, %v66, %v75
    %v88 = vsel %vm78, %v67, %v58
    %v89 = vsel %vm78, %v68, %v59
    %v90 = vsel %vm78, %v69, %v60
    %v91 = vsel %vm78, %v70, %v61
    %v92 = vsel %vm78, %v71, %v62
    %v93 = vsel %vm78, %v72, %v63
    %v94 = vsel %vm78, %v73, %v64
    %v95 = vsel %vm78, %v74, %v65
    %v96 = vsel %vm78, %v75, %v66
    %v97 = vrot.slane %v40, 2
    %v98 = vrot.slane %v42, 2
    %v99 = vrot.slane %v44, 2
    %v100 = vrot.slane %v46, 2
    %v101 = vrot.slane %v48, 2
    %v102 = vrot.slane %v50, 2
    %v103 = vrot.slane %v52, 2
    %v104 = vrot.slane %v54, 2
    %v105 = vrot.slane %v56, 2
    %v106 = vrot.slane %v41, 2
    %v107 = vrot.slane %v43, 2
    %v108 = vrot.slane %v45, 2
    %v109 = vrot.slane %v47, 2
    %v110 = vrot.slane %v49, 2
    %v111 = vrot.slane %v51, 2
    %v112 = vrot.slane %v53, 2
    %v113 = vrot.slane %v55, 2
    %v114 = vrot.slane %v57, 2
    %vm115 = vcmp.lt.s32.totalorder %v77, 6
    %v116 = vsel %vm115, %v97, %v106
    %v117 = vsel %vm115, %v98, %v107
    %v118 = vsel %vm115, %v99, %v108
    %v119 = vsel %vm115, %v100, %v109
    %v120 = vsel %vm115, %v101, %v110
    %v121 = vsel %vm115, %v102, %v111
    %v122 = vsel %vm115, %v103, %v112
    %v123 = vsel %vm115, %v104, %v113
    %v124 = vsel %vm115, %v105, %v114
    %v125 = vsel %vm115, %v106, %v97
    %v126 = vsel %vm115, %v107, %v98
    %v127 = vsel %vm115, %v108, %v99
    %v128 = vsel %vm115, %v109, %v100
    %v129 = vsel %vm115, %v110, %v101
    %v130 = vsel %vm115, %v111, %v102
    %v131 = vsel %vm115, %v112, %v103
    %v132 = vsel %vm115, %v113, %v104
    %v133 = vsel %vm115, %v114, %v105
    %v134 = vstv %s28
    %v135 = vmul.f32 %v134, %v40
    %v136 = vmul.f32 %v134, %v41
    %v137 = vmul.f32 %v134, %v42
    %v138 = vmul.f32 %v134, %v43
    %v139 = vmul.f32 %v134, %v44
    %v140 = vmul.f32 %v134, %v45
    %v141 = vmul.f32 %v134, %v46
    %v142 = vmul.f32 %v134, %v47
    %v143 = vmul.f32 %v134, %v48
    %v144 = vmul.f32 %v134, %v49
    %v145 = vmul.f32 %v134, %v50
    %v146 = vmul.f32 %v134, %v51
    %v147 = vmul.f32 %v134, %v52
    %v148 = vmul.f32 %v134, %v53
    %v149 = vstv %s37
    %v150 = vadd.f32 %v135, %v149
    %v151 = vadd.f32 %v136, %v149
    %v152 = vadd.f32 %v137, %v149
    %v153 = vadd.f32 %v138, %v149
    %v154 = vadd.f32 %v139, %v149
    %v155 = vadd.f32 %v140, %v149
    %v156 = vadd.f32 %v141, %v149
    %v157 = vadd.f32 %v142, %v149
    %v158 = vadd.f32 %v143, %v149
    %v159 = vadd.f32 %v144, %v149
    %v160 = vadd.f32 %v145, %v149
    %v161 = vadd.f32 %v146, %v149
    %v162 = vadd.f32 %v147, %v149
    %v163 = vadd.f32 %v148, %v149
    %v164 = vstv %s29
    %v165 = vmul.f32 %v164, %v79
    %v166 = vmul.f32 %v164, %v88
    %v167 = vmul.f32 %v164, %v80
    %v168 = vmul.f32 %v164, %v89
    %v169 = vmul.f32 %v164, %v81
    %v170 = vmul.f32 %v164, %v90
    %v171 = vmul.f32 %v164, %v82
    %v172 = vmul.f32 %v164, %v91
    %v173 = vmul.f32 %v164, %v83
    %v174 = vmul.f32 %v164, %v92
    %v175 = vmul.f32 %v164, %v84
    %v176 = vmul.f32 %v164, %v93
    %v177 = vmul.f32 %v164, %v85
    %v178 = vmul.f32 %v164, %v94
    %v179 = vadd.f32 %v150, %v165
    %v180 = vadd.f32 %v151, %v166
    %v181 = vadd.f32 %v152, %v167
    %v182 = vadd.f32 %v153, %v168
    %v183 = vadd.f32 %v154, %v169
    %v184 = vadd.f32 %v155, %v170
    %v185 = vadd.f32 %v156, %v171
    %v186 = vadd.f32 %v157, %v172
    %v187 = vadd.f32 %v158, %v173
    %v188 = vadd.f32 %v159, %v174
    %v189 = vadd.f32 %v160, %v175
    %v190 = vadd.f32 %v161, %v176
    %v191 = vadd.f32 %v162, %v177
    %v192 = vadd.f32 %v163, %v178
    %v193 = vstv %s30
    %v194 = vmul.f32 %v193, %v116
    %v195 = vmul.f32 %v193, %v125
    %v196 = vmul.f32 %v193, %v117
    %v197 = vmul.f32 %v193, %v126
    %v198 = vmul.f32 %v193, %v118
    %v199 = vmul.f32 %v193, %v127
    %v200 = vmul.f32 %v193, %v119
    %v201 = vmul.f32 %v193, %v128
    %v202 = vmul.f32 %v193, %v120
    %v203 = vmul.f32 %v193, %v129
    %v204 = vmul.f32 %v193, %v121
    %v205 = vmul.f32 %v193, %v130
    %v206 = vmul.f32 %v193, %v122
    %v207 = vmul.f32 %v193, %v131
    %v208 = vadd.f32 %v179, %v194
    %v209 = vadd.f32 %v180, %v195
    %v210 = vadd.f32 %v181, %v196
    %v211 = vadd.f32 %v182, %v197
    %v212 = vadd.f32 %v183, %v198
    %v213 = vadd.f32 %v184, %v199
    %v214 = vadd.f32 %v185, %v200
    %v215 = vadd.f32 %v186, %v201
    %v216 = vadd.f32 %v187, %v202
    %v217 = vadd.f32 %v188, %v203
    %v218 = vadd.f32 %v189, %v204
    %v219 = vadd.f32 %v190, %v205
    %v220 = vadd.f32 %v191, %v206
    %v221 = vadd.f32 %v192, %v207
    %v222 = vstv %s31
    %v223 = vmul.f32 %v222, %v42
    %v224 = vmul.f32 %v222, %v43
    %v225 = vmul.f32 %v222, %v44
    %v226 = vmul.f32 %v222, %v45
    %v227 = vmul.f32 %v222, %v46
    %v228 = vmul.f32 %v222, %v47
    %v229 = vmul.f32 %v222, %v48
    %v230 = vmul.f32 %v222, %v49
    %v231 = vmul.f32 %v222, %v50
    %v232 = vmul.f32 %v222, %v51
    %v233 = vmul.f32 %v222, %v52
    %v234 = vmul.f32 %v222, %v53
    %v235 = vmul.f32 %v222, %v54
    %v236 = vmul.f32 %v222, %v55
    %v237 = vstv %s32
    %v238 = vmul.f32 %v237, %v80
    %v239 = vmul.f32 %v237, %v89
    %v240 = vmul.f32 %v237, %v81
    %v241 = vmul.f32 %v237, %v90
    %v242 = vmul.f32 %v237, %v82
    %v243 = vmul.f32 %v237, %v91
    %v244 = vmul.f32 %v237, %v83
    %v245 = vmul.f32 %v237, %v92
    %v246 = vmul.f32 %v237, %v84
    %v247 = vmul.f32 %v237, %v93
    %v248 = vmul.f32 %v237, %v85
    %v249 = vmul.f32 %v237, %v94
    %v250 = vmul.f32 %v237, %v86
    %v251 = vmul.f32 %v237, %v95
    %v252 = vadd.f32 %v223, %v238
    %v253 = vadd.f32 %v224, %v239
    %v254 = vadd.f32 %v225, %v240
    %v255 = vadd.f32 %v226, %v241
    %v256 = vadd.f32 %v227, %v242
    %v257 = vadd.f32 %v228, %v243
    %v258 = vadd.f32 %v229, %v244
    %v259 = vadd.f32 %v230, %v245
    %v260 = vadd.f32 %v231, %v246
    %v261 = vadd.f32 %v232, %v247
    %v262 = vadd.f32 %v233, %v248
    %v263 = vadd.f32 %v234, %v249
    %v264 = vadd.f32 %v235, %v250
    %v265 = vadd.f32 %v236, %v251
    %v266 = vstv %s33
    %v267 = vmul.f32 %v266, %v117
    %v268 = vmul.f32 %v266, %v126
    %v269 = vmul.f32 %v266, %v118
    %v270 = vmul.f32 %v266, %v127
    %v271 = vmul.f32 %v266, %v119
    %v272 = vmul.f32 %v266, %v128
    %v273 = vmul.f32 %v266, %v120
    %v274 = vmul.f32 %v266, %v129
    %v275 = vmul.f32 %v266, %v121
    %v276 = vmul.f32 %v266, %v130
    %v277 = vmul.f32 %v266, %v122
    %v278 = vmul.f32 %v266, %v131
    %v279 = vmul.f32 %v266, %v123
    %v280 = vmul.f32 %v266, %v132
    %v281 = vadd.f32 %v252, %v267
    %v282 = vadd.f32 %v253, %v268
    %v283 = vadd.f32 %v254, %v269
    %v284 = vadd.f32 %v255, %v270
    %v285 = vadd.f32 %v256, %v271
    %v286 = vadd.f32 %v257, %v272
    %v287 = vadd.f32 %v258, %v273
    %v288 = vadd.f32 %v259, %v274
    %v289 = vadd.f32 %v260, %v275
    %v290 = vadd.f32 %v261, %v276
    %v291 = vadd.f32 %v262, %v277
    %v292 = vadd.f32 %v263, %v278
    %v293 = vadd.f32 %v264, %v279
    %v294 = vadd.f32 %v265, %v280
    %v295 = vstv %s34
    %v296 = vmul.f32 %v295, %v44
    %v297 = vmul.f32 %v295, %v45
    %v298 = vmul.f32 %v295, %v46
    %v299 = vmul.f32 %v295, %v47
    %v300 = vmul.f32 %v295, %v48
    %v301 = vmul.f32 %v295, %v49
    %v302 = vmul.f32 %v295, %v50
    %v303 = vmul.f32 %v295, %v51
    %v304 = vmul.f32 %v295, %v52
    %v305 = vmul.f32 %v295, %v53
    %v306 = vmul.f32 %v295, %v54
    %v307 = vmul.f32 %v295, %v55
    %v308 = vmul.f32 %v295, %v56
    %v309 = vmul.f32 %v295, %v57
    %v310 = vstv %s35
    %v311 = vmul.f32 %v310, %v81
    %v312 = vmul.f32 %v310, %v90
    %v313 = vmul.f32 %v310, %v82
    %v314 = vmul.f32 %v310, %v91
    %v315 = vmul.f32 %v310, %v83
    %v316 = vmul.f32 %v310, %v92
    %v317 = vmul.f32 %v310, %v84
    %v318 = vmul.f32 %v310, %v93
    %v319 = vmul.f32 %v310, %v85
    %v320 = vmul.f32 %v310, %v94
    %v321 = vmul.f32 %v310, %v86
    %v322 = vmul.f32 %v310, %v95
    %v323 = vmul.f32 %v310, %v87
    %v324 = vmul.f32 %v310, %v96
    %v325 = vadd.f32 %v296, %v311
    %v326 = vadd.f32 %v297, %v312
    %v327 = vadd.f32 %v298, %v313
    %v328 = vadd.f32 %v299, %v314
    %v329 = vadd.f32 %v300, %v315
    %v330 = vadd.f32 %v301, %v316
    %v331 = vadd.f32 %v302, %v317
    %v332 = vadd.f32 %v303, %v318
    %v333 = vadd.f32 %v304, %v319
    %v334 = vadd.f32 %v305, %v320
    %v335 = vadd.f32 %v306, %v321
    %v336 = vadd.f32 %v307, %v322
    %v337 = vadd.f32 %v308, %v323
    %v338 = vadd.f32 %v309, %v324
    %v339 = vstv %s36
    %v340 = vmul.f32 %v339, %v118
    %v341 = vmul.f32 %v339, %v127
    %v342 = vmul.f32 %v339, %v119
    %v343 = vmul.f32 %v339, %v128
    %v344 = vmul.f32 %v339, %v120
    %v345 = vmul.f32 %v339, %v129
    %v346 = vmul.f32 %v339, %v121
    %v347 = vmul.f32 %v339, %v130
    %v348 = vmul.f32 %v339, %v122
    %v349 = vmul.f32 %v339, %v131
    %v350 = vmul.f32 %v339, %v123
    %v351 = vmul.f32 %v339, %v132
    %v352 = vmul.f32 %v339, %v124
    %v353 = vmul.f32 %v339, %v133
    %v354 = vadd.f32 %v325, %v340
    %v355 = vadd.f32 %v326, %v341
    %v356 = vadd.f32 %v327, %v342
    %v357 = vadd.f32 %v328, %v343
    %v358 = vadd.f32 %v329, %v344
    %v359 = vadd.f32 %v330, %v345
    %v360 = vadd.f32 %v331, %v346
    %v361 = vadd.f32 %v332, %v347
    %v362 = vadd.f32 %v333, %v348
    %v363 = vadd.f32 %v334, %v349
    %v364 = vadd.f32 %v335, %v350
    %v365 = vadd.f32 %v336, %v351
    %v366 = vadd.f32 %v337, %v352
    %v367 = vadd.f32 %v338, %v353
    %v368 = vadd.f32 %v208, %v281
    %v369 = vadd.f32 %v209, %v282
    %v370 = vadd.f32 %v210, %v283
    %v371 = vadd.f32 %v211, %v284
    %v372 = vadd.f32 %v212, %v285
    %v373 = vadd.f32 %v213, %v286
    %v374 = vadd.f32 %v214, %v287
    %v375 = vadd.f32 %v215, %v288
    %v376 = vadd.f32 %v216, %v289
    %v377 = vadd.f32 %v217, %v290
    %v378 = vadd.f32 %v218, %v291
    %v379 = vadd.f32 %v219, %v292
    %v380 = vadd.f32 %v220, %v293
    %v381 = vadd.f32 %v221, %v294
    %v382 = vadd.f32 %v368, %v354
    %v383 = vadd.f32 %v369, %v355
    %v384 = vadd.f32 %v370, %v356
    %v385 = vadd.f32 %v371, %v357
    %v386 = vadd.f32 %v372, %v358
    %v387 = vadd.f32 %v373, %v359
    %v388 = vadd.f32 %v374, %v360
    %v389 = vadd.f32 %v375, %v361
    %v390 = vadd.f32 %v376, %v362
    %v391 = vadd.f32 %v377, %v363
    %v392 = vadd.f32 %v378, %v364
    %v393 = vadd.f32 %v379, %v365
    %v394 = vadd.f32 %v380, %v366
    %v395 = vadd.f32 %v381, %v367
    %s396 = scalar_lea.vmem %s3, %s38
    %vm397 = vcmask 64512
    %398 = vst.msk [vmem:[%s396] sm:$0xff] %vm397, %v382
    %vm399 = vcmask 62464
    %400 = vst.msk [vmem:[%s396 + $0x8] sm:$0x3f] %vm399, %v383
    %401 = vst.msk [vmem:[%s396 + $0x10] sm:$0xff] %vm397, %v384
    %402 = vst.msk [vmem:[%s396 + $0x18] sm:$0x3f] %vm399, %v385
    %403 = vst.msk [vmem:[%s396 + $0x20] sm:$0xff] %vm397, %v386
    %404 = vst.msk [vmem:[%s396 + $0x28] sm:$0x3f] %vm399, %v387
    %405 = vst.msk [vmem:[%s396 + $0x30] sm:$0xff] %vm397, %v388
    %406 = vst.msk [vmem:[%s396 + $0x38] sm:$0x3f] %vm399, %v389
    %407 = vst.msk [vmem:[%s396 + $0x40] sm:$0xff] %vm397, %v390
    %408 = vst.msk [vmem:[%s396 + $0x48] sm:$0x3f] %vm399, %v391
    %409 = vst.msk [vmem:[%s396 + $0x50] sm:$0xff] %vm397, %v392
    %410 = vst.msk [vmem:[%s396 + $0x58] sm:$0x3f] %vm399, %v393
    %411 = vst.msk [vmem:[%s396 + $0x60] sm:$0xff] %vm397, %v394
    %412 = vst.msk [vmem:[%s396 + $0x68] sm:$0x3f] %vm399, %v395
    %s413 = smul.u32 7, 16
    %s414 = scalar_lea.vmem %s2, %s413
    %v415 = vld [vmem:[%s414] sm:$0xff]
    %v416 = vld [vmem:[%s414 + $0x8] sm:$0xff]
    %v417 = vld [vmem:[%s414 + $0x10] sm:$0xff]
    %v418 = vld [vmem:[%s414 + $0x18] sm:$0xff]
    %v419 = vld [vmem:[%s414 + $0x20] sm:$0xff]
    %v420 = vld [vmem:[%s414 + $0x28] sm:$0xff]
    %v421 = vld [vmem:[%s414 + $0x30] sm:$0xff]
    %v422 = vld [vmem:[%s414 + $0x38] sm:$0xff]
    %v423 = vld [vmem:[%s414 + $0x40] sm:$0xff]
    %v424 = vld [vmem:[%s414 + $0x48] sm:$0xff]
    %v425 = vld [vmem:[%s414 + $0x50] sm:$0xff]
    %v426 = vld [vmem:[%s414 + $0x58] sm:$0xff]
    %v427 = vld [vmem:[%s414 + $0x60] sm:$0xff]
    %v428 = vld [vmem:[%s414 + $0x68] sm:$0xff]
    %v429 = vld [vmem:[%s414 + $0x70] sm:$0xff]
    %v430 = vld [vmem:[%s414 + $0x78] sm:$0xff]
    %v431 = vld [vmem:[%s414 + $0x80] sm:$0xff]
    %v432 = vld [vmem:[%s414 + $0x88] sm:$0xff]
    %v433 = vrot.slane %v415, 1
    %v434 = vrot.slane %v417, 1
    %v435 = vrot.slane %v419, 1
    %v436 = vrot.slane %v421, 1
    %v437 = vrot.slane %v423, 1
    %v438 = vrot.slane %v425, 1
    %v439 = vrot.slane %v427, 1
    %v440 = vrot.slane %v429, 1
    %v441 = vrot.slane %v431, 1
    %v442 = vrot.slane %v416, 1
    %v443 = vrot.slane %v418, 1
    %v444 = vrot.slane %v420, 1
    %v445 = vrot.slane %v422, 1
    %v446 = vrot.slane %v424, 1
    %v447 = vrot.slane %v426, 1
    %v448 = vrot.slane %v428, 1
    %v449 = vrot.slane %v430, 1
    %v450 = vrot.slane %v432, 1
    %v451 = vsel %vm78, %v433, %v442
    %v452 = vsel %vm78, %v434, %v443
    %v453 = vsel %vm78, %v435, %v444
    %v454 = vsel %vm78, %v436, %v445
    %v455 = vsel %vm78, %v437, %v446
    %v456 = vsel %vm78, %v438, %v447
    %v457 = vsel %vm78, %v439, %v448
    %v458 = vsel %vm78, %v440, %v449
    %v459 = vsel %vm78, %v441, %v450
    %v460 = vsel %vm78, %v442, %v433
    %v461 = vsel %vm78, %v443, %v434
    %v462 = vsel %vm78, %v444, %v435
    %v463 = vsel %vm78, %v445, %v436
    %v464 = vsel %vm78, %v446, %v437
    %v465 = vsel %vm78, %v447, %v438
    %v466 = vsel %vm78, %v448, %v439
    %v467 = vsel %vm78, %v449, %v440
    %v468 = vsel %vm78, %v450, %v441
    %v469 = vrot.slane %v415, 2
    %v470 = vrot.slane %v417, 2
    %v471 = vrot.slane %v419, 2
    %v472 = vrot.slane %v421, 2
    %v473 = vrot.slane %v423, 2
    %v474 = vrot.slane %v425, 2
    %v475 = vrot.slane %v427, 2
    %v476 = vrot.slane %v429, 2
    %v477 = vrot.slane %v431, 2
    %v478 = vrot.slane %v416, 2
    %v479 = vrot.slane %v418, 2
    %v480 = vrot.slane %v420, 2
    %v481 = vrot.slane %v422, 2
    %v482 = vrot.slane %v424, 2
    %v483 = vrot.slane %v426, 2
    %v484 = vrot.slane %v428, 2
    %v485 = vrot.slane %v430, 2
    %v486 = vrot.slane %v432, 2
    %v487 = vsel %vm115, %v469, %v478
    %v488 = vsel %vm115, %v470, %v479
    %v489 = vsel %vm115, %v471, %v480
    %v490 = vsel %vm115, %v472, %v481
    %v491 = vsel %vm115, %v473, %v482
    %v492 = vsel %vm115, %v474, %v483
    %v493 = vsel %vm115, %v475, %v484
    %v494 = vsel %vm115, %v476, %v485
    %v495 = vsel %vm115, %v477, %v486
    %v496 = vsel %vm115, %v478, %v469
    %v497 = vsel %vm115, %v479, %v470
    %v498 = vsel %vm115, %v480, %v471
    %v499 = vsel %vm115, %v481, %v472
    %v500 = vsel %vm115, %v482, %v473
    %v501 = vsel %vm115, %v483, %v474
    %v502 = vsel %vm115, %v484, %v475
    %v503 = vsel %vm115, %v485, %v476
    %v504 = vsel %vm115, %v486, %v477
    %v505 = vmul.f32 %v134, %v415
    %v506 = vmul.f32 %v134, %v416
    %v507 = vmul.f32 %v134, %v417
    %v508 = vmul.f32 %v134, %v418
    %v509 = vmul.f32 %v134, %v419
    %v510 = vmul.f32 %v134, %v420
    %v511 = vmul.f32 %v134, %v421
    %v512 = vmul.f32 %v134, %v422
    %v513 = vmul.f32 %v134, %v423
    %v514 = vmul.f32 %v134, %v424
    %v515 = vmul.f32 %v134, %v425
    %v516 = vmul.f32 %v134, %v426
    %v517 = vmul.f32 %v134, %v427
    %v518 = vmul.f32 %v134, %v428
    %v519 = vadd.f32 %v505, %v149
    %v520 = vadd.f32 %v506, %v149
    %v521 = vadd.f32 %v507, %v149
    %v522 = vadd.f32 %v508, %v149
    %v523 = vadd.f32 %v509, %v149
    %v524 = vadd.f32 %v510, %v149
    %v525 = vadd.f32 %v511, %v149
    %v526 = vadd.f32 %v512, %v149
    %v527 = vadd.f32 %v513, %v149
    %v528 = vadd.f32 %v514, %v149
    %v529 = vadd.f32 %v515, %v149
    %v530 = vadd.f32 %v516, %v149
    %v531 = vadd.f32 %v517, %v149
    %v532 = vadd.f32 %v518, %v149
    %v533 = vmul.f32 %v164, %v451
    %v534 = vmul.f32 %v164, %v460
    %v535 = vmul.f32 %v164, %v452
    %v536 = vmul.f32 %v164, %v461
    %v537 = vmul.f32 %v164, %v453
    %v538 = vmul.f32 %v164, %v462
    %v539 = vmul.f32 %v164, %v454
    %v540 = vmul.f32 %v164, %v463
    %v541 = vmul.f32 %v164, %v455
    %v542 = vmul.f32 %v164, %v464
    %v543 = vmul.f32 %v164, %v456
    %v544 = vmul.f32 %v164, %v465
    %v545 = vmul.f32 %v164, %v457
    %v546 = vmul.f32 %v164, %v466
    %v547 = vadd.f32 %v519, %v533
    %v548 = vadd.f32 %v520, %v534
    %v549 = vadd.f32 %v521, %v535
    %v550 = vadd.f32 %v522, %v536
    %v551 = vadd.f32 %v523, %v537
    %v552 = vadd.f32 %v524, %v538
    %v553 = vadd.f32 %v525, %v539
    %v554 = vadd.f32 %v526, %v540
    %v555 = vadd.f32 %v527, %v541
    %v556 = vadd.f32 %v528, %v542
    %v557 = vadd.f32 %v529, %v543
    %v558 = vadd.f32 %v530, %v544
    %v559 = vadd.f32 %v531, %v545
    %v560 = vadd.f32 %v532, %v546
    %v561 = vmul.f32 %v193, %v487
    %v562 = vmul.f32 %v193, %v496
    %v563 = vmul.f32 %v193, %v488
    %v564 = vmul.f32 %v193, %v497
    %v565 = vmul.f32 %v193, %v489
    %v566 = vmul.f32 %v193, %v498
    %v567 = vmul.f32 %v193, %v490
    %v568 = vmul.f32 %v193, %v499
    %v569 = vmul.f32 %v193, %v491
    %v570 = vmul.f32 %v193, %v500
    %v571 = vmul.f32 %v193, %v492
    %v572 = vmul.f32 %v193, %v501
    %v573 = vmul.f32 %v193, %v493
    %v574 = vmul.f32 %v193, %v502
    %v575 = vadd.f32 %v547, %v561
    %v576 = vadd.f32 %v548, %v562
    %v577 = vadd.f32 %v549, %v563
    %v578 = vadd.f32 %v550, %v564
    %v579 = vadd.f32 %v551, %v565
    %v580 = vadd.f32 %v552, %v566
    %v581 = vadd.f32 %v553, %v567
    %v582 = vadd.f32 %v554, %v568
    %v583 = vadd.f32 %v555, %v569
    %v584 = vadd.f32 %v556, %v570
    %v585 = vadd.f32 %v557, %v571
    %v586 = vadd.f32 %v558, %v572
    %v587 = vadd.f32 %v559, %v573
    %v588 = vadd.f32 %v560, %v574
    %v589 = vmul.f32 %v222, %v417
    %v590 = vmul.f32 %v222, %v418
    %v591 = vmul.f32 %v222, %v419
    %v592 = vmul.f32 %v222, %v420
    %v593 = vmul.f32 %v222, %v421
    %v594 = vmul.f32 %v222, %v422
    %v595 = vmul.f32 %v222, %v423
    %v596 = vmul.f32 %v222, %v424
    %v597 = vmul.f32 %v222, %v425
    %v598 = vmul.f32 %v222, %v426
    %v599 = vmul.f32 %v222, %v427
    %v600 = vmul.f32 %v222, %v428
    %v601 = vmul.f32 %v222, %v429
    %v602 = vmul.f32 %v222, %v430
    %v603 = vmul.f32 %v237, %v452
    %v604 = vmul.f32 %v237, %v461
    %v605 = vmul.f32 %v237, %v453
    %v606 = vmul.f32 %v237, %v462
    %v607 = vmul.f32 %v237, %v454
    %v608 = vmul.f32 %v237, %v463
    %v609 = vmul.f32 %v237, %v455
    %v610 = vmul.f32 %v237, %v464
    %v611 = vmul.f32 %v237, %v456
    %v612 = vmul.f32 %v237, %v465
    %v613 = vmul.f32 %v237, %v457
    %v614 = vmul.f32 %v237, %v466
    %v615 = vmul.f32 %v237, %v458
    %v616 = vmul.f32 %v237, %v467
    %v617 = vadd.f32 %v589, %v603
    %v618 = vadd.f32 %v590, %v604
    %v619 = vadd.f32 %v591, %v605
    %v620 = vadd.f32 %v592, %v606
    %v621 = vadd.f32 %v593, %v607
    %v622 = vadd.f32 %v594, %v608
    %v623 = vadd.f32 %v595, %v609
    %v624 = vadd.f32 %v596, %v610
    %v625 = vadd.f32 %v597, %v611
    %v626 = vadd.f32 %v598, %v612
    %v627 = vadd.f32 %v599, %v613
    %v628 = vadd.f32 %v600, %v614
    %v629 = vadd.f32 %v601, %v615
    %v630 = vadd.f32 %v602, %v616
    %v631 = vmul.f32 %v266, %v488
    %v632 = vmul.f32 %v266, %v497
    %v633 = vmul.f32 %v266, %v489
    %v634 = vmul.f32 %v266, %v498
    %v635 = vmul.f32 %v266, %v490
    %v636 = vmul.f32 %v266, %v499
    %v637 = vmul.f32 %v266, %v491
    %v638 = vmul.f32 %v266, %v500
    %v639 = vmul.f32 %v266, %v492
    %v640 = vmul.f32 %v266, %v501
    %v641 = vmul.f32 %v266, %v493
    %v642 = vmul.f32 %v266, %v502
    %v643 = vmul.f32 %v266, %v494
    %v644 = vmul.f32 %v266, %v503
    %v645 = vadd.f32 %v617, %v631
    %v646 = vadd.f32 %v618, %v632
    %v647 = vadd.f32 %v619, %v633
    %v648 = vadd.f32 %v620, %v634
    %v649 = vadd.f32 %v621, %v635
    %v650 = vadd.f32 %v622, %v636
    %v651 = vadd.f32 %v623, %v637
    %v652 = vadd.f32 %v624, %v638
    %v653 = vadd.f32 %v625, %v639
    %v654 = vadd.f32 %v626, %v640
    %v655 = vadd.f32 %v627, %v641
    %v656 = vadd.f32 %v628, %v642
    %v657 = vadd.f32 %v629, %v643
    %v658 = vadd.f32 %v630, %v644
    %v659 = vmul.f32 %v295, %v419
    %v660 = vmul.f32 %v295, %v420
    %v661 = vmul.f32 %v295, %v421
    %v662 = vmul.f32 %v295, %v422
    %v663 = vmul.f32 %v295, %v423
    %v664 = vmul.f32 %v295, %v424
    %v665 = vmul.f32 %v295, %v425
    %v666 = vmul.f32 %v295, %v426
    %v667 = vmul.f32 %v295, %v427
    %v668 = vmul.f32 %v295, %v428
    %v669 = vmul.f32 %v295, %v429
    %v670 = vmul.f32 %v295, %v430
    %v671 = vmul.f32 %v295, %v431
    %v672 = vmul.f32 %v295, %v432
    %v673 = vmul.f32 %v310, %v453
    %v674 = vmul.f32 %v310, %v462
    %v675 = vmul.f32 %v310, %v454
    %v676 = vmul.f32 %v310, %v463
    %v677 = vmul.f32 %v310, %v455
    %v678 = vmul.f32 %v310, %v464
    %v679 = vmul.f32 %v310, %v456
    %v680 = vmul.f32 %v310, %v465
    %v681 = vmul.f32 %v310, %v457
    %v682 = vmul.f32 %v310, %v466
    %v683 = vmul.f32 %v310, %v458
    %v684 = vmul.f32 %v310, %v467
    %v685 = vmul.f32 %v310, %v459
    %v686 = vmul.f32 %v310, %v468
    %v687 = vadd.f32 %v659, %v673
    %v688 = vadd.f32 %v660, %v674
    %v689 = vadd.f32 %v661, %v675
    %v690 = vadd.f32 %v662, %v676
    %v691 = vadd.f32 %v663, %v677
    %v692 = vadd.f32 %v664, %v678
    %v693 = vadd.f32 %v665, %v679
    %v694 = vadd.f32 %v666, %v680
    %v695 = vadd.f32 %v667, %v681
    %v696 = vadd.f32 %v668, %v682
    %v697 = vadd.f32 %v669, %v683
    %v698 = vadd.f32 %v670, %v684
    %v699 = vadd.f32 %v671, %v685
    %v700 = vadd.f32 %v672, %v686
    %v701 = vmul.f32 %v339, %v489
    %v702 = vmul.f32 %v339, %v498
    %v703 = vmul.f32 %v339, %v490
    %v704 = vmul.f32 %v339, %v499
    %v705 = vmul.f32 %v339, %v491
    %v706 = vmul.f32 %v339, %v500
    %v707 = vmul.f32 %v339, %v492
    %v708 = vmul.f32 %v339, %v501
    %v709 = vmul.f32 %v339, %v493
    %v710 = vmul.f32 %v339, %v502
    %v711 = vmul.f32 %v339, %v494
    %v712 = vmul.f32 %v339, %v503
    %v713 = vmul.f32 %v339, %v495
    %v714 = vmul.f32 %v339, %v504
    %v715 = vadd.f32 %v687, %v701
    %v716 = vadd.f32 %v688, %v702
    %v717 = vadd.f32 %v689, %v703
    %v718 = vadd.f32 %v690, %v704
    %v719 = vadd.f32 %v691, %v705
    %v720 = vadd.f32 %v692, %v706
    %v721 = vadd.f32 %v693, %v707
    %v722 = vadd.f32 %v694, %v708
    %v723 = vadd.f32 %v695, %v709
    %v724 = vadd.f32 %v696, %v710
    %v725 = vadd.f32 %v697, %v711
    %v726 = vadd.f32 %v698, %v712
    %v727 = vadd.f32 %v699, %v713
    %v728 = vadd.f32 %v700, %v714
    %v729 = vadd.f32 %v575, %v645
    %v730 = vadd.f32 %v576, %v646
    %v731 = vadd.f32 %v577, %v647
    %v732 = vadd.f32 %v578, %v648
    %v733 = vadd.f32 %v579, %v649
    %v734 = vadd.f32 %v580, %v650
    %v735 = vadd.f32 %v581, %v651
    %v736 = vadd.f32 %v582, %v652
    %v737 = vadd.f32 %v583, %v653
    %v738 = vadd.f32 %v584, %v654
    %v739 = vadd.f32 %v585, %v655
    %v740 = vadd.f32 %v586, %v656
    %v741 = vadd.f32 %v587, %v657
    %v742 = vadd.f32 %v588, %v658
    %v743 = vadd.f32 %v729, %v715
    %v744 = vadd.f32 %v730, %v716
    %v745 = vadd.f32 %v731, %v717
    %v746 = vadd.f32 %v732, %v718
    %v747 = vadd.f32 %v733, %v719
    %v748 = vadd.f32 %v734, %v720
    %v749 = vadd.f32 %v735, %v721
    %v750 = vadd.f32 %v736, %v722
    %v751 = vadd.f32 %v737, %v723
    %v752 = vadd.f32 %v738, %v724
    %v753 = vadd.f32 %v739, %v725
    %v754 = vadd.f32 %v740, %v726
    %v755 = vadd.f32 %v741, %v727
    %v756 = vadd.f32 %v742, %v728
    %s757 = scalar_lea.vmem %s3, %s413
    %758 = vst.msk [vmem:[%s757] sm:$0xff] %vm397, %v743
    %759 = vst.msk [vmem:[%s757 + $0x8] sm:$0x3f] %vm399, %v744
    %760 = vst.msk [vmem:[%s757 + $0x10] sm:$0xff] %vm397, %v745
    %761 = vst.msk [vmem:[%s757 + $0x18] sm:$0x3f] %vm399, %v746
    %762 = vst.msk [vmem:[%s757 + $0x20] sm:$0xff] %vm397, %v747
    %763 = vst.msk [vmem:[%s757 + $0x28] sm:$0x3f] %vm399, %v748
    %764 = vst.msk [vmem:[%s757 + $0x30] sm:$0xff] %vm397, %v749
    %765 = vst.msk [vmem:[%s757 + $0x38] sm:$0x3f] %vm399, %v750
    %766 = vst.msk [vmem:[%s757 + $0x40] sm:$0xff] %vm397, %v751
    %767 = vst.msk [vmem:[%s757 + $0x48] sm:$0x3f] %vm399, %v752
    %768 = vst.msk [vmem:[%s757 + $0x50] sm:$0xff] %vm397, %v753
    %769 = vst.msk [vmem:[%s757 + $0x58] sm:$0x3f] %vm399, %v754
    %770 = vst.msk [vmem:[%s757 + $0x60] sm:$0xff] %vm397, %v755
    %771 = vst.msk [vmem:[%s757 + $0x68] sm:$0x3f] %vm399, %v756
    // Predicated region
    $region18: #{tpu_custom_call.1} parent=1 // pred_check
      _
    $region19: #{tpu_custom_call.1} parent=1 // pred_check_branch
      %773 = sbr.rel (0) target = $region21
    $region20: #{tpu_custom_call.1} parent=1 // pred_region
      _
    $region21: #{tpu_custom_call.1} parent=1 // pred_fallthru
      _
    // Predicated region
    $region22: #{tpu_custom_call.1} parent=1 // pred_check
      _
    $region23: #{tpu_custom_call.1} parent=1 // pred_check_branch
      %775 = sbr.rel (0) target = $region25
    $region24: #{tpu_custom_call.1} parent=1 // pred_region
      _
    $region25: #{tpu_custom_call.1} parent=1 // pred_fallthru
      _
    %776 = vsyncpa [#allocation4], 1

</llo_original>
